<compile_context>
chip_gen: v7x
topology: tpu7x:2x2x1
jax: 0.10.0
libtpu: 0.0.40
codegen_flags: <defaults>
</compile_context>

<pallas_src>
import functools
import math

import jax
import jax.numpy as jnp
import numpy as np
from jax.experimental import pallas as pl
from jax.experimental.pallas import tpu as pltpu


def _round_up(x, m):
    return ((x + m - 1) // m) * m


def _pick_tile(dim, cap, align):
    """Largest tile (multiple of `align`, <= cap) that divides the padded dim."""
    dp = _round_up(dim, align)
    if dp <= cap:
        return dp, dp
    cap = (cap // align) * align
    for t in range(cap, 0, -align):
        if dp % t == 0:
            return t, dp
    return cap, _round_up(dim, cap)


def _pad2(a, rows, cols):
    r, c = a.shape
    if (rows, cols) == (r, c):
        return a
    return jnp.pad(a, ((0, rows - r), (0, cols - c)))


# ----------------------- in-kernel exact GELU (erf) ------------------------

def _gelu_exact(x):
    # Exact (erf) GELU.  erf is computed with Abramowitz-Stegun 7.1.26 (|err| < 1.5e-7)
    # so the fused matmul epilogue never depends on lax.erf lowering inside Mosaic.
    # TODO(synk): switch to jax.lax.erf once its Mosaic lowering is confirmed everywhere.
    z = x * 0.7071067811865476
    a = jnp.abs(z)
    t = 1.0 / (1.0 + 0.3275911 * a)
    poly = t * (0.254829592 + t * (-0.284496736 + t * (1.421413741
               + t * (-1.453152027 + t * 1.061405429))))
    erf_a = 1.0 - poly * jnp.exp(-a * a)
    erf_z = jnp.where(z < 0.0, -erf_a, erf_a)
    return 0.5 * x * (1.0 + erf_z)


# ------------- fused tiled matmul (+bias [+GELU | +add+LayerNorm]) ----------

def _mm_epilogue(acc, b_ref, extra, o_ref, mode, eps, n_valid):
    y = acc + b_ref[...]
    if mode == "gelu":
        y = _gelu_exact(y)
    elif mode == "add_ln":
        r_ref, g_ref, be_ref = extra
        y = y + r_ref[...].astype(jnp.float32)
        if n_valid == y.shape[-1]:
            mu = jnp.mean(y, axis=-1, keepdims=True)
            var = jnp.mean(jnp.square(y - mu), axis=-1, keepdims=True)
        else:
            # Padded output columns are exactly zero (zero-padded w / bias / residual),
            # so sums over the full tile equal sums over the valid columns.
            mu = jnp.sum(y, axis=-1, keepdims=True) * (1.0 / n_valid)
            d = y - mu
            mask = jax.lax.broadcasted_iota(jnp.int32, y.shape, 1) < n_valid
            var = jnp.sum(jnp.where(mask, d * d, 0.0), axis=-1,
                          keepdims=True) * (1.0 / n_valid)
        y = (y - mu) * jax.lax.rsqrt(var + eps) * g_ref[...] + be_ref[...]
    o_ref[...] = y.astype(o_ref.dtype)


def _mm_kernel(x_ref, w_ref, b_ref, *rest, mode, eps, n_valid, multi_k):
    if multi_k:
        *extra, o_ref, acc_ref = rest
        k = pl.program_id(2)

        @pl.when(k == 0)
        def _():
            acc_ref[...] = jnp.zeros_like(acc_ref)

        acc_ref[...] += jnp.dot(x_ref[...], w_ref[...],
                                preferred_element_type=jnp.float32)

        @pl.when(k == pl.num_programs(2) - 1)
        def _():
            _mm_epilogue(acc_ref[...], b_ref, extra, o_ref, mode, eps, n_valid)
    else:
        # Single K step: accumulate directly, no VMEM scratch / extra copy.
        *extra, o_ref = rest
        acc = jnp.dot(x_ref[...], w_ref[...], preferred_element_type=jnp.float32)
        _mm_epilogue(acc, b_ref, extra, o_ref, mode, eps, n_valid)


def _linear_impl(x, w, b, *, mode="none", residual=None, gamma=None, beta=None,
                 eps=1e-12, out_dtype=jnp.bfloat16):
    *lead, K = x.shape
    N = w.shape[1]
    M = int(np.prod(lead)) if lead else 1

    tm, Mp = _pick_tile(M, 512, 16)          # bf16 rows: multiples of 16
    tk, Kp = _pick_tile(K, 768, 128)         # tk divides padded K (no zero-only K tiles)
    if mode == "add_ln":
        Np = _round_up(N, 128)
        tn = Np                              # LN epilogue needs the whole row in one tile
    else:
        tn, Np = _pick_tile(N, 512, 128)

    # v7x: keep both TensorCores busy when the M/N grid would collapse to one step.
    if Mp // tm == 1 and Np // tn == 1 and tm >= 32 and tm % 32 == 0:
        tm //= 2

    x2 = _pad2(x.reshape(M, K).astype(jnp.bfloat16), Mp, Kp)
    w2 = _pad2(w.astype(jnp.bfloat16), Kp, Np)
    b2 = _pad2(b.reshape(1, N).astype(jnp.float32), 1, Np)

    inputs = [x2, w2, b2]
    in_specs = [
        pl.BlockSpec((tm, tk), lambda i, j, k: (i, k)),
        pl.BlockSpec((tk, tn), lambda i, j, k: (k, j)),
        pl.BlockSpec((1, tn), lambda i, j, k: (0, j)),
    ]
    if mode == "add_ln":
        inputs += [
            _pad2(residual.reshape(M, N).astype(jnp.bfloat16), Mp, Np),
            _pad2(gamma.reshape(1, N).astype(jnp.float32), 1, Np),
            _pad2(beta.reshape(1, N).astype(jnp.float32), 1, Np),
        ]
        in_specs += [
            pl.BlockSpec((tm, tn), lambda i, j, k: (i, j)),
            pl.BlockSpec((1, tn), lambda i, j, k: (0, j)),
            pl.BlockSpec((1, tn), lambda i, j, k: (0, j)),
        ]

    multi_k = (Kp // tk) > 1
    kernel = functools.partial(_mm_kernel, mode=mode, eps=float(eps),
                               n_valid=N, multi_k=multi_k)
    out = pl.pallas_call(
        kernel,
        grid=(Mp // tm, Np // tn, Kp // tk),
        in_specs=in_specs,
        out_specs=pl.BlockSpec((tm, tn), lambda i, j, k: (i, j)),
        out_shape=jax.ShapeDtypeStruct((Mp, Np), out_dtype),
        scratch_shapes=[pltpu.VMEM((tm, tn), jnp.float32)] if multi_k else [],
        compiler_params=pltpu.CompilerParams(
            dimension_semantics=("parallel", "parallel", "arbitrary")),
    )(*inputs)
    return out[:M, :N].reshape(*lead, N)


def linear(x, w, b, out_dtype=jnp.bfloat16):
    return _linear_impl(x, w, b, mode="none", out_dtype=out_dtype)


def linear_gelu(x, w, b, out_dtype=jnp.bfloat16):
    return _linear_impl(x, w, b, mode="gelu", out_dtype=out_dtype)


def linear_add_ln(x, w, b, residual, gamma, beta, eps, out_dtype=jnp.bfloat16):
    return _linear_impl(x, w, b, mode="add_ln", residual=residual, gamma=gamma,
                        beta=beta, eps=eps, out_dtype=out_dtype)


# --------------------------- LayerNorm kernel ------------------------------

def _ln_kernel(x_ref, g_ref, b_ref, o_ref, *, eps):
    x = x_ref[...].astype(jnp.float32)
    mu = jnp.mean(x, axis=-1, keepdims=True)
    var = jnp.mean(jnp.square(x - mu), axis=-1, keepdims=True)
    o_ref[...] = ((x - mu) * jax.lax.rsqrt(var + eps) * g_ref[...]
                  + b_ref[...]).astype(o_ref.dtype)


def layernorm(x, gamma, beta, eps, out_dtype=jnp.bfloat16):
    """Row-tiled LayerNorm; native-dtype I/O (bf16 preferred), f32 internal math."""
    *lead, E = x.shape
    M = int(np.prod(lead)) if lead else 1
    tm, Mp = _pick_tile(M, 256, 16)          # cap tile so multi-row inputs keep >=2 steps
    x2 = x.reshape(M, E)
    if Mp != M:
        x2 = jnp.pad(x2, ((0, Mp - M), (0, 0)))
    out = pl.pallas_call(
        functools.partial(_ln_kernel, eps=float(eps)),
        grid=(Mp // tm,),
        in_specs=[pl.BlockSpec((tm, E), lambda i: (i, 0)),
                  pl.BlockSpec((1, E), lambda i: (0, 0)),
                  pl.BlockSpec((1, E), lambda i: (0, 0))],
        out_specs=pl.BlockSpec((tm, E), lambda i: (i, 0)),
        out_shape=jax.ShapeDtypeStruct((Mp, E), out_dtype),
        compiler_params=pltpu.CompilerParams(dimension_semantics=("parallel",)),
    )(x2, gamma.reshape(1, E).astype(jnp.float32),
      beta.reshape(1, E).astype(jnp.float32))
    return out[:M].reshape(*lead, E)


# --------------------------- attention kernels -----------------------------

def _bert_attn_kernel(qkv_ref, bias_ref, o_ref, *, num_heads, head_dim, scale):
    # One batch element per grid step; heads are static lane slices of the fused QKV
    # block, so there is no HBM head-split / K-transpose pass between Pallas calls.
    # TODO(synk): for sequence lengths >= ~1024 switch to flash-style KV-block tiling
    # (online softmax) to keep the (S,S) intermediates inside v7x's 64 MiB VMEM.
    E = num_heads * head_dim
    bias = bias_ref[0]                                     # (1, S) additive key bias
    outs = []
    for h in range(num_heads):
        q = qkv_ref[0, :, h * head_dim:(h + 1) * head_dim]
        k = qkv_ref[0, :, E + h * head_dim:E + (h + 1) * head_dim]
        v = qkv_ref[0, :, 2 * E + h * head_dim:2 * E + (h + 1) * head_dim]
        s = jax.lax.dot_general(q, k, (((1,), (1,)), ((), ())),
                                preferred_element_type=jnp.float32) * scale + bias
        s = s - jnp.max(s, axis=-1, keepdims=True)
        p = jnp.exp(s)
        inv = pl.reciprocal(jnp.sum(p, axis=-1, keepdims=True), approx=True)
        p = (p * inv).astype(v.dtype)
        outs.append(jnp.dot(p, v, preferred_element_type=jnp.float32))
    o_ref[0] = jnp.concatenate(outs, axis=-1).astype(o_ref.dtype)   # lane-dense store


def bert_attention(qkv, mask_bias, num_heads):
    """qkv: (B, S, 3E) fused projections, mask_bias: (B, 1, S) additive bias."""
    B, S, threeE = qkv.shape
    E = threeE // 3
    Dh = E // num_heads
    return pl.pallas_call(
        functools.partial(_bert_attn_kernel, num_heads=num_heads, head_dim=Dh,
                          scale=1.0 / math.sqrt(Dh)),
        grid=(B,),
        in_specs=[pl.BlockSpec((1, S, threeE), lambda b: (b, 0, 0)),
                  pl.BlockSpec((1, 1, S), lambda b: (b, 0, 0))],
        out_specs=pl.BlockSpec((1, S, E), lambda b: (b, 0, 0)),
        out_shape=jax.ShapeDtypeStruct((B, S, E), jnp.bfloat16),
        compiler_params=pltpu.CompilerParams(dimension_semantics=("parallel",)),
    )(qkv.astype(jnp.bfloat16), mask_bias.astype(jnp.float32))


def _vision_attn_kernel(qkv_ref, o_ref, *, num_heads, head_dim, scale):
    # Reproduces nn.MultiheadAttention(batch_first=False) fed (B, S, E): attention over
    # axis 0 (length L = image batch) with axis 1 (patch positions) as the batch.  A whole
    # block of G patch positions is handled with one batched dot per head.
    E = num_heads * head_dim
    outs = []
    for h in range(num_heads):
        q = qkv_ref[:, :, h * head_dim:(h + 1) * head_dim]               # (L, G, Dh)
        k = qkv_ref[:, :, E + h * head_dim:E + (h + 1) * head_dim]
        v = qkv_ref[:, :, 2 * E + h * head_dim:2 * E + (h + 1) * head_dim]
        s = jnp.einsum('lnd,mnd->nlm', q, k,
                       preferred_element_type=jnp.float32) * scale        # (G, L, L)
        s = s - jnp.max(s, axis=-1, keepdims=True)
        p = jnp.exp(s)
        inv = pl.reciprocal(jnp.sum(p, axis=-1, keepdims=True), approx=True)
        p = (p * inv).astype(v.dtype)
        outs.append(jnp.einsum('nlm,mnd->lnd', p, v,
                               preferred_element_type=jnp.float32))        # (L, G, Dh)
    o_ref[...] = jnp.concatenate(outs, axis=-1).astype(o_ref.dtype)


def vision_attention(qkv, num_heads):
    """qkv: (L, N, 3E) where L is the attention axis (batch_first=False quirk)."""
    L, N, threeE = qkv.shape
    E = threeE // 3
    Dh = E // num_heads
    Npad = _round_up(N, 8)
    qkv_b = qkv.astype(jnp.bfloat16)
    if Npad != N:
        qkv_b = jnp.pad(qkv_b, ((0, 0), (0, Npad - N), (0, 0)))
    G = 8
    for cand in range(min(Npad, 128), 7, -8):   # many patch positions per grid step
        if Npad % cand == 0:
            G = cand
            break
    out = pl.pallas_call(
        functools.partial(_vision_attn_kernel, num_heads=num_heads, head_dim=Dh,
                          scale=1.0 / math.sqrt(Dh)),
        grid=(Npad // G,),
        in_specs=[pl.BlockSpec((L, G, threeE), lambda i: (0, i, 0))],
        out_specs=pl.BlockSpec((L, G, E), lambda i: (0, i, 0)),
        out_shape=jax.ShapeDtypeStruct((L, Npad, E), jnp.bfloat16),
        compiler_params=pltpu.CompilerParams(dimension_semantics=("parallel",)),
    )(qkv_b)
    return out[:, :N, :]


# ------------------------------ BERT branch -------------------------------

def bert_forward(bp, input_ids, attention_mask, cfg):
    B, S = input_ids.shape
    H = cfg["num_attention_heads"]
    eps = cfg["layer_norm_eps"]

    emb = (
        jnp.take(bp["word_emb"], input_ids, axis=0)
        + bp["pos_emb"][:S][None, :, :]
        + bp["type_emb"][0][None, None, :]          # token_type_ids == 0
    )
    h = layernorm(emb, bp["emb_ln_g"], bp["emb_ln_b"], eps)          # (B, S, E) bf16

    # HF extended attention mask kept as a tiny (B, 1, S) additive bias; -1e9 (not
    # finfo.min) so fully-masked rows stay finite after max-subtraction.
    mask_bias = (1.0 - attention_mask.astype(jnp.float32))[:, None, :] * -1e9

    for lp in bp["layers"]:
        qkv = linear(h, lp["qkv_w"], lp["qkv_b"])                    # fused Q/K/V (B,S,3E)
        ctx = bert_attention(qkv, mask_bias, H)                      # (B,S,E) bf16
        h = linear_add_ln(ctx, lp["ao_w"], lp["ao_b"], h,
                          lp["ln1_g"], lp["ln1_b"], eps)             # attn-out + add + LN
        ffn = linear_gelu(h, lp["i_w"], lp["i_b"])                   # FFN up + GELU fused
        h = linear_add_ln(ffn, lp["o_w"], lp["o_b"], h,
                          lp["ln2_g"], lp["ln2_b"], eps)             # FFN down + add + LN
    return h  # last_hidden_state (B, S, E) bf16


# ----------------------------- Vision branch ------------------------------

def vision_encoder_forward(vp, pixel_values, cfg, vis):
    E = cfg["hidden_size"]
    P = vis["patch_size"]
    Hn = vis["num_heads"]
    B, C, Himg, Wimg = pixel_values.shape
    nH, nW = Himg // P, Wimg // P

    # Conv2d(kernel=stride=P) == im2col + matmul; row-major patch order matches
    # PyTorch's flatten(2).transpose(1, 2).
    patches = (
        pixel_values.reshape(B, C, nH, P, nW, P)
        .transpose(0, 2, 4, 1, 3, 5)
        .reshape(B, nH * nW, C * P * P)
    )
    wmat = vp["patch_w"].reshape(E, C * P * P).T   # (C*P*P, E)
    x = linear(patches, wmat, vp["patch_b"])       # (B, nP, E) bf16

    cls = jnp.broadcast_to(vp["cls_token"], (B, 1, E)).astype(x.dtype)
    x = jnp.concatenate([cls, x], axis=1) + vp["pos_embed"]

    for lp in vp["layers"]:
        qkv = linear(x, lp["in_w"], lp["in_b"])                      # (L, N, 3E)
        attn = vision_attention(qkv, Hn)                             # (L, N, E)
        x = linear_add_ln(attn, lp["out_w"], lp["out_b"], x,
                          lp["n1_g"], lp["n1_b"], 1e-5)
        hmid = linear_gelu(x, lp["l1_w"], lp["l1_b"])
        x = linear_add_ln(hmid, lp["l2_w"], lp["l2_b"], x,
                          lp["n2_g"], lp["n2_b"], 1e-5)

    x = layernorm(x, vp["norm_g"], vp["norm_b"], 1e-5)
    return x[:, 0]  # CLS feature (B, E)


# ------------------------------ Full model --------------------------------

def layoutlmv3_token_classification(params, input_ids, attention_mask, bbox,
                                    pixel_values, cfg, vis, labels=None):
    del bbox  # unused by the reference forward pass
    text = bert_forward(params["bert"], input_ids, attention_mask, cfg)        # (B, S, E)
    visual = vision_encoder_forward(params["vision"], pixel_values, cfg, vis)  # (B, E)
    visual = jnp.broadcast_to(visual[:, None, :], text.shape)                  # (B, S, E)
    fused = jnp.concatenate([text, visual], axis=-1)                           # (B, S, 2E)
    fused = linear(fused, params["fusion_w"], params["fusion_b"])              # (B, S, E)
    # dropout: identity (inference)
    logits = linear(fused, params["cls_w"], params["cls_b"],
                    out_dtype=jnp.float32)                                     # (B, S, labels)

    loss = None
    if labels is not None:
        n = cfg["num_labels"]
        logp = jax.nn.log_softmax(logits.reshape(-1, n), axis=-1)
        loss = -jnp.mean(jnp.take_along_axis(logp, labels.reshape(-1, 1), axis=-1))
    return {"loss": loss, "logits": logits}


# --------------------------- Parameter creation ----------------------------

def init_all_params(key, cfg, vis):
    E = cfg["hidden_size"]
    I = cfg["intermediate_size"]
    ks = iter(jax.random.split(key, 512))

    def rnd(shape):
        return 0.02 * jax.random.normal(next(ks), shape, dtype=jnp.float32)

    zeros = lambda s: jnp.zeros(s, jnp.float32)
    ones = lambda s: jnp.ones(s, jnp.float32)

    bert_layers = []
    for _ in range(cfg["num_hidden_layers"]):
        bert_layers.append(dict(
            qkv_w=rnd((E, 3 * E)), qkv_b=zeros((3 * E,)),   # fused Q/K/V projection
            ao_w=rnd((E, E)), ao_b=zeros((E,)),
            ln1_g=ones((E,)), ln1_b=zeros((E,)),
            i_w=rnd((E, I)), i_b=zeros((I,)),
            o_w=rnd((I, E)), o_b=zeros((E,)),
            ln2_g=ones((E,)), ln2_b=zeros((E,)),
        ))
    bert = dict(
        word_emb=rnd((cfg["vocab_size"], E)),
        pos_emb=rnd((cfg["max_position_embeddings"], E)),
        type_emb=rnd((cfg["type_vocab_size"], E)),
        emb_ln_g=ones((E,)), emb_ln_b=zeros((E,)),
        layers=bert_layers,
    )

    P, C = vis["patch_size"], vis["in_channels"]
    nP = (vis["img_size"] // P) ** 2
    Iv = int(E * vis["mlp_ratio"])
    v_layers = []
    for _ in range(vis["depth"]):
        v_layers.append(dict(
            in_w=rnd((E, 3 * E)), in_b=zeros((3 * E,)),
            out_w=rnd((E, E)), out_b=zeros((E,)),
            l1_w=rnd((E, Iv)), l1_b=zeros((Iv,)),
            l2_w=rnd((Iv, E)), l2_b=zeros((E,)),
            n1_g=ones((E,)), n1_b=zeros((E,)),
            n2_g=ones((E,)), n2_b=zeros((E,)),
        ))
    vision = dict(
        patch_w=rnd((E, C, P, P)),          # torch Conv2d weight layout (out, in, kh, kw)
        patch_b=zeros((E,)),
        cls_token=rnd((1, 1, E)),
        pos_embed=rnd((1, nP + 1, E)),
        layers=v_layers,
        norm_g=ones((E,)), norm_b=zeros((E,)),
    )

    return dict(
        bert=bert,
        vision=vision,
        fusion_w=rnd((2 * E, E)), fusion_b=zeros((E,)),
        cls_w=rnd((E, cfg["num_labels"])), cls_b=zeros((cfg["num_labels"],)),
    )


# ---------------------------------- Main -----------------------------------

if __name__ == "__main__":
    # Small, module-consistent configuration.
    cfg = dict(
        vocab_size=100,
        hidden_size=48,                 # divisible by 12 (vision heads) and 4 (bert heads)
        num_hidden_layers=2,
        num_attention_heads=4,
        intermediate_size=192,
        max_position_embeddings=64,
        type_vocab_size=2,
        hidden_dropout_prob=0.1,
        attention_probs_dropout_prob=0.1,
        layer_norm_eps=1e-12,
        num_labels=5,
    )
    vis = dict(
        img_size=32,                    # small stand-in for the 224x224 input
        patch_size=16,
        in_channels=3,
        depth=6,
        num_heads=12,
        mlp_ratio=4.0,
    )

    key = jax.random.PRNGKey(0)
    pkey, k_ids, k_bbox, k_pix = jax.random.split(key, 4)
    params = init_all_params(pkey, cfg, vis)

    B, S = 2, 8
    input_ids = jax.random.randint(k_ids, (B, S), 0, cfg["vocab_size"], dtype=jnp.int32)
    attention_mask = jnp.ones((B, S), dtype=jnp.int32)
    bbox = jax.random.randint(k_bbox, (B, S, 4), 0, 1000, dtype=jnp.int32)  # unused by forward
    pixel_values = jax.random.normal(
        k_pix, (B, vis["in_channels"], vis["img_size"], vis["img_size"]), dtype=jnp.float32
    )

    out = layoutlmv3_token_classification(
        params, input_ids, attention_mask, bbox, pixel_values, cfg, vis, labels=None
    )
    logits = jax.block_until_ready(out["logits"])
    assert logits.shape == (B, S, cfg["num_labels"])
    assert out["loss"] is None
    assert bool(jnp.all(jnp.isfinite(logits)))
    print("KERNEL_OK")
</pallas_src>

<mosaic_0001>
module attributes {stable_mosaic.version = 11 : i64} {
  func.func @_ln_kernel(%arg0: i32, %arg1: memref<16x48xf32, #tpu.memory_space<vmem>>, %arg2: memref<1x48xf32, #tpu.memory_space<vmem>>, %arg3: memref<1x48xf32, #tpu.memory_space<vmem>>, %arg4: memref<16x48xbf16, #tpu.memory_space<vmem>>) attributes {dimension_semantics = [#tpu.dimension_semantics<parallel>], iteration_bounds = array<i64: 1>, scalar_prefetch = 0 : i64, scratch_operands = 0 : i64, tpu.core_type = #tpu.core_type<tc>, window_params = [{transform_indices = @transform_0, window_bounds = array<i64: 16, 48>}, {pipeline_mode = #tpu.pipeline_mode<synchronous>, transform_indices = @transform_1, window_bounds = array<i64: 1, 48>}, {pipeline_mode = #tpu.pipeline_mode<synchronous>, transform_indices = @transform_2, window_bounds = array<i64: 1, 48>}, {transform_indices = @transform_3, window_bounds = array<i64: 16, 48>}]} {
    %c0 = arith.constant 0 : index
    %c0_0 = arith.constant 0 : index
    %0 = vector.load %arg1[%c0, %c0_0] : memref<16x48xf32, #tpu.memory_space<vmem>>, vector<16x48xf32>
    %cst = arith.constant dense<0.000000e+00> : vector<16xf32>
    %1 = vector.multi_reduction <add>, %0, %cst [1] : vector<16x48xf32> to vector<16xf32>
    %2 = vector.shape_cast %1 : vector<16xf32> to vector<16x1xf32>
    %cst_1 = arith.constant 4.800000e+01 : f32
    %3 = vector.broadcast %cst_1 : f32 to vector<16x1xf32>
    %4 = arith.divf %2, %3 : vector<16x1xf32>
    %5 = vector.broadcast %4 : vector<16x1xf32> to vector<16x48xf32>
    %6 = arith.subf %0, %5 : vector<16x48xf32>
    %7 = arith.mulf %6, %6 : vector<16x48xf32>
    %cst_2 = arith.constant dense<0.000000e+00> : vector<16xf32>
    %8 = vector.multi_reduction <add>, %7, %cst_2 [1] : vector<16x48xf32> to vector<16xf32>
    %9 = vector.shape_cast %8 : vector<16xf32> to vector<16x1xf32>
    %cst_3 = arith.constant 4.800000e+01 : f32
    %10 = vector.broadcast %cst_3 : f32 to vector<16x1xf32>
    %11 = arith.divf %9, %10 : vector<16x1xf32>
    %12 = vector.broadcast %4 : vector<16x1xf32> to vector<16x48xf32>
    %13 = arith.subf %0, %12 : vector<16x48xf32>
    %cst_4 = arith.constant 9.99999996E-13 : f32
    %14 = vector.broadcast %cst_4 : f32 to vector<16x1xf32>
    %15 = arith.addf %11, %14 : vector<16x1xf32>
    %16 = math.rsqrt %15 : vector<16x1xf32>
    %17 = vector.broadcast %16 : vector<16x1xf32> to vector<16x48xf32>
    %18 = arith.mulf %13, %17 : vector<16x48xf32>
    %c0_5 = arith.constant 0 : index
    %c0_6 = arith.constant 0 : index
    %19 = vector.load %arg2[%c0_5, %c0_6] : memref<1x48xf32, #tpu.memory_space<vmem>>, vector<1x48xf32>
    %20 = vector.broadcast %19 : vector<1x48xf32> to vector<16x48xf32>
    %21 = arith.mulf %18, %20 : vector<16x48xf32>
    %c0_7 = arith.constant 0 : index
    %c0_8 = arith.constant 0 : index
    %22 = vector.load %arg3[%c0_7, %c0_8] : memref<1x48xf32, #tpu.memory_space<vmem>>, vector<1x48xf32>
    %23 = vector.broadcast %22 : vector<1x48xf32> to vector<16x48xf32>
    %24 = arith.addf %21, %23 : vector<16x48xf32>
    %25 = arith.truncf %24 : vector<16x48xf32> to vector<16x48xbf16>
    %c0_9 = arith.constant 0 : index
    %c0_10 = arith.constant 0 : index
    %26 = vector.load %arg4[%c0_9, %c0_10] : memref<16x48xbf16, #tpu.memory_space<vmem>>, vector<16x48xbf16>
    tpu.vector_store %arg4[%c0_9, %c0_10], %25 {strides = array<i32>} : memref<16x48xbf16, #tpu.memory_space<vmem>>, vector<16x48xbf16>,
    return
  }
  func.func @transform_0(%arg0: i32) -> (i32, i32) {
    %c0_i32 = arith.constant 0 : i32
    %c0_i32_0 = arith.constant 0 : i32
    return %arg0, %c0_i32 : i32, i32
  }
  func.func @transform_1(%arg0: i32) -> (i32, i32) {
    %c0_i32 = arith.constant 0 : i32
    %c0_i32_0 = arith.constant 0 : i32
    %c0_i32_1 = arith.constant 0 : i32
    return %c0_i32, %c0_i32_0 : i32, i32
  }
  func.func @transform_2(%arg0: i32) -> (i32, i32) {
    %c0_i32 = arith.constant 0 : i32
    %c0_i32_0 = arith.constant 0 : i32
    %c0_i32_1 = arith.constant 0 : i32
    return %c0_i32, %c0_i32_0 : i32, i32
  }
  func.func @transform_3(%arg0: i32) -> (i32, i32) {
    %c0_i32 = arith.constant 0 : i32
    %c0_i32_0 = arith.constant 0 : i32
    return %arg0, %c0_i32 : i32, i32
  }
}

</mosaic_0001>

<llo_original>
// kernel: tpu_custom_call.1
$region0: #{tpu_custom_call.1}
  #allocation0 [shape = 'u32[]', space=smem, size = 0x4, offset = 0x4, fixed_abs, tag = 'smem constant byte address 0x4 - core index']
  #allocation1 [shape = 'u32[144,128]{1,0:T(1,128)}', space=vmem, size = 0x12000, scoped, tag = 'internal scratch']
  %s0 = inlined_call_operand.hbm [shape: f32[16,48], index: 0, kind: input, shape index: {}]
  %s1 = inlined_call_operand.vmem [shape: f32[1,48], index: 1, kind: input, shape index: {}]
  %s2 = inlined_call_operand.vmem [shape: f32[1,48], index: 2, kind: input, shape index: {}]
  %s3 = inlined_call_operand.hbm [shape: bf16[16,48], index: 3, kind: output, shape index: {}]
  %s4 = sld [smem:[#allocation0]]
  $region26: #{tpu_custom_call.1} parent=0
    _
  %s6 = ssub.s32 1, %s4
  %s7 = scalar_select 0, %s6, %s4
  $region1: #{tpu_custom_call.1} parent=0
    #allocation2 [shape = 'u8[8192]{0}', space=vmem, size = 0x2000, scoped, tag = 'input window, operand 0, single buffered']
    #allocation3 [shape = 's32[1]{0}', space=sflag, size = 0x4, scoped, tag = 'scoped memory for tpu_custom_call.1']
    #allocation4 [shape = 's32[1]{0}', space=sflag, size = 0x4, scoped, tag = 'scoped memory for tpu_custom_call.1']
    #allocation5 [shape = 'u8[4096]{0}', space=vmem, size = 0x1000, scoped, tag = 'output window, operand 0, single buffered']
    %8 = vsyncpa [#allocation3], 0
    %9 = vsyncpa [#allocation4], 0
    // Predicated region
    $region2: #{tpu_custom_call.1} parent=1 // pred_check
      _
    $region3: #{tpu_custom_call.1} parent=1 // pred_check_branch
      %11 = sbr.rel (0) target = $region5
    $region4: #{tpu_custom_call.1} parent=1 // pred_region
      %s13 = ssub.s32 256, 256
      %14 = vsyncadd [#allocation3], %s13
      %s15 = sshll.u32 [#allocation2], 4
      %s16 = int_to_ptr.vmem [resolvable:$true] %s15
      %21 = dma.hbm_to_vmem [thread:$0]  %s0, 256, %s16, [#allocation3], 128, 128, 8
    $region5: #{tpu_custom_call.1} parent=1 // pred_fallthru
      _
    // Predicated region
    $region6: #{tpu_custom_call.1} parent=1 // pred_check
      _
    $region7: #{tpu_custom_call.1} parent=1 // pred_check_branch
      %23 = sbr.rel (0) target = $region9
    $region8: #{tpu_custom_call.1} parent=1 // pred_region
      _
    $region9: #{tpu_custom_call.1} parent=1 // pred_fallthru
      _
    // Predicated region
    $region10: #{tpu_custom_call.1} parent=1 // pred_check
      _
    $region11: #{tpu_custom_call.1} parent=1 // pred_check_branch
      %25 = sbr.rel (0) target = $region13
    $region12: #{tpu_custom_call.1} parent=1 // pred_region
      _
    $region13: #{tpu_custom_call.1} parent=1 // pred_fallthru
      _
    // Predicated region
    $region14: #{tpu_custom_call.1} parent=1 // pred_check
      _
    $region15: #{tpu_custom_call.1} parent=1 // pred_check_branch
      %27 = sbr.rel (0) target = $region17
    $region16: #{tpu_custom_call.1} parent=1 // pred_region
      %28 = dma.done [#allocation3], 256
    $region17: #{tpu_custom_call.1} parent=1 // pred_fallthru
      _
    %v29 = vld [vmem:[#allocation2] sm:$0xff]
    %v30 = vld [vmem:[#allocation2 + $0x8] sm:$0xff]
    %vm31 = vcmask 392192
    %v32 = vsel %vm31, %v29, 0.0
    %33 = vadd.xlane.f32.xlu0 %v32
    %v34 = vpop.xlane.xlu0 %33
    %v35 = vsel %vm31, %v30, 0.0
    %36 = vadd.xlane.f32.xlu0 %v35
    %v37 = vpop.xlane.xlu0 %36
    %v38 = vrcp.pop 48.0
    %v39 = vmul.f32 %v34, %v38
    %v40 = vmul.f32 %v37, %v38
    %v41 = vsub.f32 %v29, %v39
    %v42 = vsub.f32 %v30, %v40
    %v43 = vmul.f32 %v41, %v41
    %v44 = vmul.f32 %v42, %v42
    %v45 = vsel %vm31, %v43, 0.0
    %46 = vadd.xlane.f32.xlu0 %v45
    %v47 = vpop.xlane.xlu0 %46
    %v48 = vsel %vm31, %v44, 0.0
    %49 = vadd.xlane.f32.xlu0 %v48
    %v50 = vpop.xlane.xlu0 %49
    %v51 = vmul.f32 %v47, %v38
    %v52 = vmul.f32 %v50, %v38
    %v53 = vadd.f32 %v51, 1e-12
    %v54 = vadd.f32 %v52, 1e-12
    %v55 = vrsqrt.pop %v53
    %v56 = vrsqrt.pop %v54
    %v57 = vmul.f32 %v41, %v55
    %v58 = vmul.f32 %v42, %v56
    %v59 = vld [vmem:[%s1] sm:$0x1]
    %v61 = vlaneseq
    %v62 = vshrl.u32 %v61, 7
    %v63 = vsub.s32 0, %v62
    %v64 = vrot.slane %v59, %v63
    %v66 = vmul.f32 %v57, %v64
    %v67 = vmul.f32 %v58, %v64
    %v68 = vld [vmem:[%s2] sm:$0x1]
    %v70 = vlaneseq
    %v71 = vshrl.u32 %v70, 7
    %v72 = vsub.s32 0, %v71
    %v73 = vrot.slane %v68, %v72
    %v75 = vadd.f32 %v66, %v73
    %v76 = vadd.f32 %v67, %v73
    %v77 = vpack.c.bf16 %v76, %v75
    %v79 = vunpack.c.l.b16 %v77
    %v80 = vunpack.c.h.b16 %v77
    %v81 = vpack.c.b16 %v79, %v79
    %v82 = vpack.c.b16 %v80, %v80
    %vm85 = vcmask 388096
    %86 = vst.msk [vmem:[#allocation5] sm:$0xf] %vm85, %v81
    %87 = vst.msk [vmem:[#allocation5 + $0x4] sm:$0xf] %vm85, %v82
    // Predicated region
    $region18: #{tpu_custom_call.1} parent=1 // pred_check
      _
    $region19: #{tpu_custom_call.1} parent=1 // pred_check_branch
      %89 = sbr.rel (0) target = $region21
    $region20: #{tpu_custom_call.1} parent=1 // pred_region
      %s91 = ssub.s32 128, 128
      %92 = vsyncadd [#allocation4], %s91
      %s93 = sshll.u32 [#allocation5], 4
      %s94 = int_to_ptr.vmem [resolvable:$true] %s93
      %99 = dma.vmem_to_hbm [thread:$0]  %s94, 128, %s3, [#allocation4], 64, 64, 4
    $region21: #{tpu_custom_call.1} parent=1 // pred_fallthru
      _
    // Predicated region
    $region22: #{tpu_custom_call.1} parent=1 // pred_check
      _
    $region23: #{tpu_custom_call.1} parent=1 // pred_check_branch
      %101 = sbr.rel (0) target = $region25
    $region24: #{tpu_custom_call.1} parent=1 // pred_region
      %102 = dma.done [#allocation4], 128
    $region25: #{tpu_custom_call.1} parent=1 // pred_fallthru
      _
    %103 = vsyncpa [#allocation3], 1
    %104 = vsyncpa [#allocation4], 1

</llo_original>
